<compile_context>
chip_gen: v7x
topology: tpu7x:2x2x1
jax: 0.10.0
libtpu: 0.0.40
codegen_flags: <defaults>
</compile_context>

<pallas_src>
import math

import jax
import jax.numpy as jnp
from jax.experimental import pallas as pl
from jax.experimental.pallas import tpu as pltpu

BN_EPS = 1e-5
BN_SCALE_DEFAULT = 1.0 / math.sqrt(1.0 + BN_EPS)  # eval-mode BN(1) with default stats

# in_feat -> (pool kernel size, pool stride)   [padding is always 0]
_POOL_CFG = {3: (3, 1), 116: (40, 38)}

_LANES = 128


# ----------------------------------------------------------------------------
# Fused kernel: sublane-window max + ReLU + BatchNorm affine, lane-dense output
# ----------------------------------------------------------------------------
def _make_pool_kernel(ksize, stride, l_out, scale, shift):
    def kernel(x_ref, o_ref):
        # x_ref: (F, tm) tile — pooling positions on sublanes, B*C samples on lanes.
        # o_ref: (l_out, tm) tile — each row is a full-lane-dense output slab.
        for j in range(l_out):  # static unroll, l_out <= 3
            lo = j * stride
            w = x_ref[lo:lo + ksize, :]                 # (ksize, tm) window slice
            # Sublane-axis reduce: tree of elementwise vreg maxes (VPU) + one
            # intra-vreg sublane reduce.  Result is a lane-dense (1, tm) row.
            m = jnp.max(w, axis=0, keepdims=True)
            h = jnp.maximum(m, 0.0) * scale             # ReLU + BN scale (VPU)
            if shift != 0.0:                            # static; skipped for default BN
                h = h + shift
            o_ref[j:j + 1, :] = h.astype(o_ref.dtype)   # direct lane-dense row store
    return kernel


def _choose_col_tile(M, max_tile):
    """Pick the lane-axis tile (over the B*C rows) and grid size.

    Constraints / goals:
      - tile must be a multiple of 128 lanes, or equal to M (BlockSpec rule);
      - big tiles (up to max_tile) to amortize per-grid-step overhead;
      - when M is large, never collapse to a single grid step so the
        "parallel" axis can be sharded across TensorCores (v7x megacore).
    """
    if M <= 512:
        return M, 1  # tiny problem: launch-latency dominated, single step is best
    half = pl.cdiv(M, 2)
    tm = pl.cdiv(half, _LANES) * _LANES     # 128-lane aligned
    tm = min(tm, max_tile)
    return tm, pl.cdiv(M, tm)


def maxpool_downsample(
    X,
    in_feat=None,
    *,
    bn_weight=1.0,
    bn_bias=0.0,
    bn_running_mean=0.0,
    bn_running_var=1.0,
    bn_eps=BN_EPS,
    max_row_tile=8192,
):
    """Pallas equivalent of MaxPoolDownSample.forward (eval-mode BatchNorm).

    X: (B, C, F).  Returns (B*C, 1, L_out) float32, matching the PyTorch
    module's output shape.
    """
    B, C, F = X.shape
    if in_feat is None:
        in_feat = F
    assert in_feat == F, f"in_feat={in_feat} must match last dim {F}"
    ksize, stride = _POOL_CFG[in_feat]
    l_out = (F - ksize) // stride + 1

    # Explicit dtype handling: BN math is done in fp32 (PyTorch default module dtype).
    if X.dtype != jnp.float32:
        X = X.astype(jnp.float32)

    # Fold eval-mode BatchNorm1d(1) into a scalar (scale, shift).
    scale = float(bn_weight) / math.sqrt(float(bn_running_var) + float(bn_eps))
    shift = float(bn_bias) - float(bn_running_mean) * scale

    M = B * C
    # Present the activation as (F, M): pool axis on sublanes, samples on lanes.
    # Layout plumbing only — free if the producer already supplies it transposed.
    xT = X.reshape(M, F).T  # (F, M)

    tm, grid_m = _choose_col_tile(M, max_row_tile)

    cost = pl.CostEstimate(
        flops=M * (ksize * l_out + 2),      # window maxima + ReLU + BN scale
        transcendentals=0,
        bytes_accessed=M * F * 4 + M * l_out * 4,
    )

    outT = pl.pallas_call(
        _make_pool_kernel(ksize, stride, l_out, scale, shift),
        out_shape=jax.ShapeDtypeStruct((l_out, M), jnp.float32),
        grid_spec=pltpu.PrefetchScalarGridSpec(
            num_scalar_prefetch=0,
            grid=(grid_m,),
            in_specs=[pl.BlockSpec((F, tm), lambda i: (0, i))],
            out_specs=pl.BlockSpec((l_out, tm), lambda i: (0, i)),
        ),
        compiler_params=pltpu.CompilerParams(dimension_semantics=("parallel",)),
        cost_estimate=cost,
    )(xT)

    # Restore PyTorch's (B*C, 1, L_out) shape; the result is tiny (M x l_out).
    return outT.T.reshape(M, 1, l_out)


# ----------------------------------------------------------------------------
# Pure-JAX reference (PyTorch eval-mode semantics) for a correctness check
# ----------------------------------------------------------------------------
def reference(X, in_feat):
    B, C, F = X.shape
    ksize, stride = _POOL_CFG[in_feat]
    l_out = (F - ksize) // stride + 1
    x = X.reshape(B * C, F).astype(jnp.float32)
    pooled = jnp.stack(
        [jnp.max(x[:, j * stride:j * stride + ksize], axis=-1) for j in range(l_out)],
        axis=-1)
    h = jnp.maximum(pooled, 0.0) * BN_SCALE_DEFAULT
    return h.reshape(B * C, 1, l_out)


if __name__ == "__main__":
    key = jax.random.PRNGKey(0)
    k1, k2, k3 = jax.random.split(key, 3)

    # Config 1: in_feat == 3  -> MaxPool1d(3, 1, 0), output length 1
    B, C = 2, 116
    X3 = jax.random.normal(k1, (B, C, 3), jnp.float32)
    y3 = jax.block_until_ready(maxpool_downsample(X3, 3))
    assert y3.shape == (B * C, 1, 1), y3.shape
    err3 = float(jnp.max(jnp.abs(y3 - reference(X3, 3))))
    assert err3 < 1e-5, f"in_feat=3 mismatch: {err3}"

    # Config 2: in_feat == 116 -> MaxPool1d(40, 38, 0), output length 3
    X116 = jax.random.normal(k2, (B, C, 116), jnp.float32)
    y116 = jax.block_until_ready(maxpool_downsample(X116, 116))
    assert y116.shape == (B * C, 1, 3), y116.shape
    err116 = float(jnp.max(jnp.abs(y116 - reference(X116, 116))))
    assert err116 < 1e-5, f"in_feat=116 mismatch: {err116}"

    # Config 3: larger B*C to exercise the multi-step grid + ragged last tile.
    Bb = 8
    Xbig = jax.random.normal(k3, (Bb, C, 116), jnp.float32)
    ybig = jax.block_until_ready(maxpool_downsample(Xbig, 116))
    assert ybig.shape == (Bb * C, 1, 3), ybig.shape
    errbig = float(jnp.max(jnp.abs(ybig - reference(Xbig, 116))))
    assert errbig < 1e-5, f"tiled in_feat=116 mismatch: {errbig}"

    print("KERNEL_OK")
</pallas_src>

<mosaic_0001>
module attributes {stable_mosaic.version = 11 : i64} {
  func.func @kernel(%arg0: i32, %arg1: memref<3x232xf32, #tpu.memory_space<vmem>>, %arg2: memref<1x232xf32, #tpu.memory_space<vmem>>) attributes {dimension_semantics = [#tpu.dimension_semantics<parallel>], iteration_bounds = array<i64: 1>, scalar_prefetch = 0 : i64, scratch_operands = 0 : i64, tpu.core_type = #tpu.core_type<tc>, window_params = [{transform_indices = @transform_0, window_bounds = array<i64: 3, 232>}, {transform_indices = @transform_1, window_bounds = array<i64: 1, 232>}]} {
    %c0 = arith.constant 0 : index
    %c0_0 = arith.constant 0 : index
    %0 = vector.load %arg1[%c0, %c0_0] : memref<3x232xf32, #tpu.memory_space<vmem>>, vector<3x232xf32>
    %cst = arith.constant dense<0xFF800000> : vector<232xf32>
    %1 = vector.multi_reduction <maximumf>, %0, %cst [0] : vector<3x232xf32> to vector<232xf32>
    %2 = vector.shape_cast %1 : vector<232xf32> to vector<1x232xf32>
    %cst_1 = arith.constant 0.000000e+00 : f32
    %3 = vector.broadcast %cst_1 : f32 to vector<1x232xf32>
    %4 = arith.maximumf %2, %3 : vector<1x232xf32>
    %cst_2 = arith.constant 0.999994993 : f32
    %5 = vector.broadcast %cst_2 : f32 to vector<1x232xf32>
    %6 = arith.mulf %4, %5 : vector<1x232xf32>
    %c0_3 = arith.constant 0 : index
    %c0_4 = arith.constant 0 : index
    %7 = vector.load %arg2[%c0_3, %c0_4] : memref<1x232xf32, #tpu.memory_space<vmem>>, vector<1x232xf32>
    tpu.vector_store %arg2[%c0_3, %c0_4], %6 {strides = array<i32>} : memref<1x232xf32, #tpu.memory_space<vmem>>, vector<1x232xf32>,
    return
  }
  func.func @transform_0(%arg0: i32) -> (i32, i32) {
    %c0_i32 = arith.constant 0 : i32
    %c0_i32_0 = arith.constant 0 : i32
    return %c0_i32, %arg0 : i32, i32
  }
  func.func @transform_1(%arg0: i32) -> (i32, i32) {
    %c0_i32 = arith.constant 0 : i32
    %c0_i32_0 = arith.constant 0 : i32
    return %c0_i32, %arg0 : i32, i32
  }
}

</mosaic_0001>

<llo_original>
// kernel: tpu_custom_call.1
$region0: #{tpu_custom_call.1}
  #allocation0 [shape = 'u32[]', space=smem, size = 0x4, offset = 0x4, fixed_abs, tag = 'smem constant byte address 0x4 - core index']
  #allocation1 [shape = 'u32[144,128]{1,0:T(1,128)}', space=vmem, size = 0x12000, scoped, tag = 'internal scratch']
  %s0 = inlined_call_operand.hbm [shape: f32[3,232], index: 0, kind: input, shape index: {}]
  %s1 = inlined_call_operand.hbm [shape: f32[1,232], index: 1, kind: output, shape index: {}]
  %s2 = sld [smem:[#allocation0]]
  $region18: #{tpu_custom_call.1} parent=0
    _
  %s4 = ssub.s32 1, %s2
  %s5 = scalar_select 0, %s4, %s2
  $region1: #{tpu_custom_call.1} parent=0
    #allocation2 [shape = 'u8[4096]{0}', space=vmem, size = 0x1000, scoped, tag = 'input window, operand 0, single buffered']
    #allocation3 [shape = 's32[1]{0}', space=sflag, size = 0x4, scoped, tag = 'scoped memory for tpu_custom_call.1']
    #allocation4 [shape = 's32[1]{0}', space=sflag, size = 0x4, scoped, tag = 'scoped memory for tpu_custom_call.1']
    #allocation5 [shape = 'u8[1024]{0}', space=vmem, size = 0x400, scoped, tag = 'output window, operand 0, single buffered']
    %6 = vsyncpa [#allocation3], 0
    %7 = vsyncpa [#allocation4], 0
    // Predicated region
    $region2: #{tpu_custom_call.1} parent=1 // pred_check
      _
    $region3: #{tpu_custom_call.1} parent=1 // pred_check_branch
      %9 = sbr.rel (0) target = $region5
    $region4: #{tpu_custom_call.1} parent=1 // pred_region
      %s11 = ssub.s32 128, 128
      %12 = vsyncadd [#allocation3], %s11
      %s14 = sshll.u32 [#allocation2], 4
      %s15 = int_to_ptr.vmem [resolvable:$true] %s14
      %17 = dma.hbm_to_vmem [thread:$0]  %s0, 128, %s15, [#allocation3]
    $region5: #{tpu_custom_call.1} parent=1 // pred_fallthru
      _
    // Predicated region
    $region6: #{tpu_custom_call.1} parent=1 // pred_check
      _
    $region7: #{tpu_custom_call.1} parent=1 // pred_check_branch
      %19 = sbr.rel (0) target = $region9
    $region8: #{tpu_custom_call.1} parent=1 // pred_region
      %20 = dma.done [#allocation3], 128
    $region9: #{tpu_custom_call.1} parent=1 // pred_fallthru
      _
    %v21 = vld [vmem:[#allocation2] sm:$0x77]
    %v23 = vcombine.high %v21, %v21
    %vm25 = vcmask 1042432
    %v26 = vsel %vm25, %v21, -inf
    %v27 = vrot.slane %v26, 4
    %v28 = vmax.f32 %v26, %v27
    %v29 = vrot.slane %v28, 2
    %v30 = vmax.f32 %v28, %v29
    %v31 = vrot.slane %v30, 1
    %v32 = vmax.f32 %v30, %v31
    %vm33 = vcmask 845824
    %v34 = vsel %vm33, %v23, -inf
    %v35 = vrot.slane %v34, 4
    %v36 = vmax.f32 %v34, %v35
    %v37 = vrot.slane %v36, 2
    %v38 = vmax.f32 %v36, %v37
    %v39 = vrot.slane %v38, 1
    %v40 = vmax.f32 %v38, %v39
    %v41 = vmax.f32 %v32, 0.0
    %v42 = vmax.f32 %v40, 0.0
    %v43 = vmul.f32 %v41, 0.999995
    %v44 = vmul.f32 %v42, 0.999995
    %v47 = vcombine.low %v43, %v44
    %v49 = vunpack.c.l.s4 1966171168
    %v50 = vunpack.c.0.s8 %v49
    %v51 = vlaneseq
    %v52 = vshrl.u32 %v51, 7
    %v53 = vsub.s32 %v50, %v52
    %v54 = vrot.slane %v47, %v53
    %v56 = vunpack.c.l.s4 1966171168
    %v57 = vunpack.c.0.s8 %v56
    %v58 = vlaneseq
    %v59 = vshrl.u32 %v58, 7
    %v60 = vsub.s32 %v57, %v59
    %v61 = vrot.slane %v54, %v60
    %v63 = vlaneseq
    %vm64 = vcmp.ge.s32.totalorder %v63, 0
    %vm65 = vcmp.lt.s32.totalorder %v63, 232
    %vm66 = vmand %vm64, %vm65
    %67 = vst.msk [vmem:[#allocation5] sm:$0x3] %vm66, %v61
    // Predicated region
    $region10: #{tpu_custom_call.1} parent=1 // pred_check
      _
    $region11: #{tpu_custom_call.1} parent=1 // pred_check_branch
      %69 = sbr.rel (0) target = $region13
    $region12: #{tpu_custom_call.1} parent=1 // pred_region
      %s71 = ssub.s32 32, 32
      %72 = vsyncadd [#allocation4], %s71
      %s74 = sshll.u32 [#allocation5], 4
      %s75 = int_to_ptr.vmem [resolvable:$true] %s74
      %77 = dma.vmem_to_hbm [thread:$0]  %s75, 32, %s1, [#allocation4]
    $region13: #{tpu_custom_call.1} parent=1 // pred_fallthru
      _
    // Predicated region
    $region14: #{tpu_custom_call.1} parent=1 // pred_check
      _
    $region15: #{tpu_custom_call.1} parent=1 // pred_check_branch
      %79 = sbr.rel (0) target = $region17
    $region16: #{tpu_custom_call.1} parent=1 // pred_region
      %80 = dma.done [#allocation4], 32
    $region17: #{tpu_custom_call.1} parent=1 // pred_fallthru
      _
    %81 = vsyncpa [#allocation3], 1
    %82 = vsyncpa [#allocation4], 1

</llo_original>
